<compile_context>
chip_gen: v5e
topology: v5e:2x2
jax: 0.10.0
libtpu: 0.0.40
codegen_flags: <defaults>
</compile_context>

<pallas_src>
import functools

import jax
import jax.numpy as jnp
from jax import lax
from jax.experimental import pallas as pl
from jax.experimental.pallas import tpu as pltpu


# cv2 GaussianBlur(ksize=5, sigma=0) fixed taps: [1, 4, 6, 4, 1] / 16
_W5 = (0.0625, 0.25, 0.375, 0.25, 0.0625)


# ---------------------------------------------------------------------------
# In-kernel helpers (VPU shifted adds with REFLECT_101 borders)
# ---------------------------------------------------------------------------

def _shift_reflect101(v, d, axis):
    """result[..., i, ...] = v[..., i + d, ...] along `axis` with REFLECT_101 border."""
    n = v.shape[axis]

    def take(lo, hi):
        idx = [slice(None)] * v.ndim
        idx[axis] = slice(lo, hi)
        return v[tuple(idx)]

    if d == 0:
        return v
    if d == -1:
        return jnp.concatenate([take(1, 2), take(0, n - 1)], axis=axis)
    if d == -2:
        return jnp.concatenate([take(2, 3), take(1, 2), take(0, n - 2)], axis=axis)
    if d == 1:
        return jnp.concatenate([take(1, n), take(n - 2, n - 1)], axis=axis)
    if d == 2:
        return jnp.concatenate([take(2, n), take(n - 2, n - 1), take(n - 3, n - 2)],
                               axis=axis)
    raise ValueError("|d| must be <= 2")


def _blur5(v, axis):
    """5-tap [1,4,6,4,1]/16 filter along `axis` (exact f32 arithmetic)."""
    acc = _W5[2] * v
    for d, w in ((-2, _W5[0]), (-1, _W5[1]), (1, _W5[3]), (2, _W5[4])):
        acc = acc + w * _shift_reflect101(v, d, axis)
    return acc


def _to_u8_range(x, scale):
    # np.uint8(255 * x) for x in [0, 1] (floor == trunc for non-negative values).
    # TODO(synk): np.uint8 wraps modulo 256 for out-of-range float inputs; we clip instead.
    return jnp.floor(jnp.clip(scale * x.astype(jnp.float32), 0.0, 255.0))


# ---------------------------------------------------------------------------
# Pallas kernels
# ---------------------------------------------------------------------------

def _hblur_kernel(x_ref, o_ref, *, scale):
    # (TM, W) row tile: fused uint8 conversion + horizontal 5-tap blur (no halo needed).
    v = _to_u8_range(x_ref[...], scale)
    o_ref[...] = _blur5(v, axis=1)


def _vblur_kernel(h_ref, o_ref):
    # (H, TC) column tile: vertical 5-tap blur + cv2 fixed-point rounding (round half up).
    b = _blur5(h_ref[...], axis=0)
    o_ref[...] = jnp.clip(jnp.floor(b + 0.5), 0.0, 255.0)


def _mask_kernel(x_ref, m_ref, o_ref, *, scale):
    # (TM, W) row tile: fused conversion + exterior zeroing (uint8 mask stream)
    # + final cast to the caller's dtype in the store path.
    v = _to_u8_range(x_ref[...], scale)
    o_ref[...] = jnp.where(m_ref[...] != 0, v, 0.0).astype(o_ref.dtype)


def _row_tile(h):
    return h if h <= 512 else 512      # 512 is a multiple of 8 -> always a legal tile


def _col_tile(w):
    return w if w <= 512 else 512      # 512 is a multiple of 128 -> always a legal tile


def _gaussian_blur_u8(x2d, scale):
    """cv2.GaussianBlur((5,5), 0) of the uint8-converted image. Returns uint8-valued f32."""
    H, W = x2d.shape

    tm = _row_tile(H)
    hpass = pl.pallas_call(
        functools.partial(_hblur_kernel, scale=scale),
        out_shape=jax.ShapeDtypeStruct((H, W), jnp.float32),
        grid=(pl.cdiv(H, tm),),
        in_specs=[pl.BlockSpec((tm, W), lambda i: (i, 0))],
        out_specs=pl.BlockSpec((tm, W), lambda i: (i, 0)),
        compiler_params=pltpu.CompilerParams(dimension_semantics=("parallel",)),
    )(x2d)

    tc = _col_tile(W)
    return pl.pallas_call(
        _vblur_kernel,
        out_shape=jax.ShapeDtypeStruct((H, W), jnp.float32),
        grid=(pl.cdiv(W, tc),),
        in_specs=[pl.BlockSpec((H, tc), lambda j: (0, j))],
        out_specs=pl.BlockSpec((H, tc), lambda j: (0, j)),
        compiler_params=pltpu.CompilerParams(dimension_semantics=("parallel",)),
    )(hpass)


def _apply_mask(x2d, mask_u8, scale, out_dtype):
    H, W = x2d.shape
    tm = _row_tile(H)
    return pl.pallas_call(
        functools.partial(_mask_kernel, scale=scale),
        out_shape=jax.ShapeDtypeStruct((H, W), out_dtype),
        grid=(pl.cdiv(H, tm),),
        in_specs=[pl.BlockSpec((tm, W), lambda i: (i, 0)),
                  pl.BlockSpec((tm, W), lambda i: (i, 0))],
        out_specs=pl.BlockSpec((tm, W), lambda i: (i, 0)),
        compiler_params=pltpu.CompilerParams(dimension_semantics=("parallel",)),
    )(x2d, mask_u8)


# ---------------------------------------------------------------------------
# Device-side (jitted) pipeline pieces that have no clean Pallas mapping
# ---------------------------------------------------------------------------

def _otsu_threshold(hist):
    """Otsu threshold from a 256-bin histogram (cv2 convention: foreground is value > t)."""
    bins = jnp.arange(256, dtype=jnp.float32)
    total = jnp.sum(hist)
    sum_all = jnp.sum(bins * hist)
    wB = jnp.cumsum(hist)                     # class 0: values <= t
    wF = total - wB
    sumB = jnp.cumsum(bins * hist)
    mB = jnp.where(wB > 0, sumB / jnp.maximum(wB, 1.0), 0.0)
    mF = jnp.where(wF > 0, (sum_all - sumB) / jnp.maximum(wF, 1.0), 0.0)
    between = wB * wF * (mB - mF) ** 2
    between = jnp.where((wB > 0) & (wF > 0), between, -1.0)
    return bins[jnp.argmax(between)]


def _label_components(mask):
    """8-connected component labels (int32 min-index per component; background = H*W)."""
    H, W = mask.shape
    n = H * W
    sentinel = jnp.int32(n)
    idx = jnp.arange(n, dtype=jnp.int32).reshape(H, W)
    lab0 = jnp.where(mask, idx, sentinel)

    def propagate(lab):
        p = jnp.pad(lab, 1, constant_values=n)
        m = lab
        for dy in range(3):
            for dx in range(3):
                m = jnp.minimum(m, p[dy:dy + H, dx:dx + W])
        m = jnp.where(mask, m, sentinel)
        # pointer jumping (label-of-label hop) for fast convergence
        flat = m.reshape(-1)
        hop = flat[jnp.minimum(flat, n - 1)].reshape(H, W)
        return jnp.where(mask, jnp.minimum(m, hop), sentinel)

    def cond(state):
        _, changed, it = state
        return changed & (it < n)

    def body(state):
        lab, _, it = state
        new = propagate(lab)
        return new, jnp.any(new != lab), it + 1

    lab, _, _ = lax.while_loop(cond, body, (lab0, jnp.bool_(True), jnp.int32(0)))
    return lab


@functools.partial(jax.jit, static_argnames=("scale", "out_dtype"))
def _exterior_pipeline(x2d, scale, out_dtype):
    """x2d: (H, W) float32. Returns the masked image in out_dtype (uint8-range values)."""
    H, W = x2d.shape
    n = H * W

    # 1) fused uint8 conversion + 5x5 Gaussian blur (two tiled Pallas VPU passes)
    blur = _gaussian_blur_u8(x2d, scale)

    # 2) Otsu threshold over strictly-positive blurred pixels.
    #    O(H*W) bincount, no (H*W, 256) intermediate.
    # TODO(synk): could be fused into _vblur_kernel as a (1, 256) grid accumulator.
    vals = blur.reshape(-1)
    hist = jnp.bincount(vals.astype(jnp.int32),
                        weights=(vals > 0.0).astype(jnp.float32), length=256)
    thresh = _otsu_threshold(hist)
    bin_img = blur > thresh

    # 3) largest connected foreground component (≈ largest contour), O(H*W) sizes
    labels = _label_components(bin_img)
    sizes = jax.ops.segment_sum(bin_img.reshape(-1).astype(jnp.int32),
                                labels.reshape(-1), num_segments=n + 1)
    best = jnp.argmax(sizes)
    has_body = sizes[best] > 0
    body = bin_img & (labels == best)

    # 4) fill holes: complement components that do not touch the image border
    #    (drawContours with thickness=-1 fills the outer contour). Border test via
    #    an O(H*W) label lookup table instead of an (H, W, 2H+2W) broadcast.
    comp = jnp.logical_not(body)
    lab2 = _label_components(comp)
    border = jnp.concatenate([lab2[0, :], lab2[-1, :], lab2[:, 0], lab2[:, -1]])
    is_border_label = jnp.zeros((n + 1,), jnp.bool_).at[border].set(True)
    holes = comp & jnp.logical_not(is_border_label[lab2])
    body_mask = body | holes

    # 5) zero the exterior (Pallas); if no foreground at all, keep the (uint8) image
    mask_u8 = jnp.where(has_body, body_mask, True).astype(jnp.uint8)
    return _apply_mask(x2d, mask_u8, scale, out_dtype)


# ---------------------------------------------------------------------------
# Module ports
# ---------------------------------------------------------------------------

class ExteriorExclusion:
    """JAX/Pallas port of the OpenCV-based ExteriorExclusion module. x: (1, 1, H, W)."""

    def __call__(self, x):
        if jnp.issubdtype(x.dtype, jnp.floating):
            scale = 255.0          # np.uint8(255 * x)
        elif x.dtype == jnp.uint8:
            scale = 1.0
        else:
            raise ValueError('x must have uint8 or float dtype')
        img = x[0, 0].astype(jnp.float32)
        out = _exterior_pipeline(img, scale=scale, out_dtype=jnp.dtype(x.dtype))
        # same quirk as the original: float inputs come back holding uint8-range
        # values (0..255), not [0, 1]
        return out[None, None]


class RandomExteriorExclusion:
    """Applies ExteriorExclusion with probability p (mirrors torch.rand(1) < p)."""

    def __init__(self, p=0.5):
        self.p = p
        self.ext_exclusion = ExteriorExclusion()

    def __call__(self, x, key):
        # single host sync for the Bernoulli gate; everything else stays on device
        if float(jax.random.uniform(key)) < self.p:
            x = self.ext_exclusion(x)
        return x


# ---------------------------------------------------------------------------
# Demo / smoke test
# ---------------------------------------------------------------------------

if __name__ == "__main__":
    key = jax.random.PRNGKey(0)
    k_img, k_gate = jax.random.split(key)

    # the module's forward indexes x[0, 0]: single-image, single-channel NCHW input
    x = jax.random.uniform(k_img, (1, 1, 16, 16), dtype=jnp.float32)

    aug = RandomExteriorExclusion(p=1.0)     # p=1 so the Pallas path always runs
    y = aug(x, k_gate)
    y = jax.block_until_ready(y)

    assert y.shape == x.shape and y.dtype == x.dtype
    assert bool(jnp.all(jnp.isfinite(y)))
    # output values are uint8-valued floats (0..255), matching the PyTorch module
    assert bool(jnp.all((y >= 0.0) & (y <= 255.0)))

    print("KERNEL_OK")
</pallas_src>

<mosaic_0001>
module attributes {stable_mosaic.version = 11 : i64} {
  func.func @_hblur_kernel(%arg0: i32, %arg1: memref<16x16xf32, #tpu.memory_space<vmem>>, %arg2: memref<16x16xf32, #tpu.memory_space<vmem>>) attributes {dimension_semantics = [#tpu.dimension_semantics<parallel>], iteration_bounds = array<i64: 1>, scalar_prefetch = 0 : i64, scratch_operands = 0 : i64, tpu.core_type = #tpu.core_type<tc>, window_params = [{transform_indices = @transform_0, window_bounds = array<i64: 16, 16>}, {transform_indices = @transform_1, window_bounds = array<i64: 16, 16>}]} {
    %c0 = arith.constant 0 : index
    %c0_0 = arith.constant 0 : index
    %0 = vector.load %arg1[%c0, %c0_0] : memref<16x16xf32, #tpu.memory_space<vmem>>, vector<16x16xf32>
    %cst = arith.constant 2.550000e+02 : f32
    %1 = vector.broadcast %cst : f32 to vector<16x16xf32>
    %2 = arith.mulf %1, %0 : vector<16x16xf32>
    %cst_1 = arith.constant 0.000000e+00 : f32
    %cst_2 = arith.constant 2.550000e+02 : f32
    %3 = vector.broadcast %cst_1 : f32 to vector<16x16xf32>
    %4 = arith.maximumf %3, %2 : vector<16x16xf32>
    %5 = vector.broadcast %cst_2 : f32 to vector<16x16xf32>
    %6 = arith.minimumf %5, %4 : vector<16x16xf32>
    %7 = math.floor %6 : vector<16x16xf32>
    %cst_3 = arith.constant 3.750000e-01 : f32
    %8 = vector.broadcast %cst_3 : f32 to vector<16x16xf32>
    %9 = arith.mulf %8, %7 : vector<16x16xf32>
    %10 = vector.extract_strided_slice %7 {offsets = [0, 2], sizes = [16, 1], strides = [1, 1]} : vector<16x16xf32> to vector<16x1xf32>
    %11 = vector.extract_strided_slice %7 {offsets = [0, 1], sizes = [16, 1], strides = [1, 1]} : vector<16x16xf32> to vector<16x1xf32>
    %12 = vector.extract_strided_slice %7 {offsets = [0, 0], sizes = [16, 14], strides = [1, 1]} : vector<16x16xf32> to vector<16x14xf32>
    %13 = tpu.concatenate %10, %11, %12 in 1 : vector<16x1xf32>, vector<16x1xf32>, vector<16x14xf32> -> vector<16x16xf32>
    %cst_4 = arith.constant 6.250000e-02 : f32
    %14 = vector.broadcast %cst_4 : f32 to vector<16x16xf32>
    %15 = arith.mulf %14, %13 : vector<16x16xf32>
    %16 = arith.addf %9, %15 : vector<16x16xf32>
    %17 = vector.extract_strided_slice %7 {offsets = [0, 1], sizes = [16, 1], strides = [1, 1]} : vector<16x16xf32> to vector<16x1xf32>
    %18 = vector.extract_strided_slice %7 {offsets = [0, 0], sizes = [16, 15], strides = [1, 1]} : vector<16x16xf32> to vector<16x15xf32>
    %19 = tpu.concatenate %17, %18 in 1 : vector<16x1xf32>, vector<16x15xf32> -> vector<16x16xf32>
    %cst_5 = arith.constant 2.500000e-01 : f32
    %20 = vector.broadcast %cst_5 : f32 to vector<16x16xf32>
    %21 = arith.mulf %20, %19 : vector<16x16xf32>
    %22 = arith.addf %16, %21 : vector<16x16xf32>
    %23 = vector.extract_strided_slice %7 {offsets = [0, 1], sizes = [16, 15], strides = [1, 1]} : vector<16x16xf32> to vector<16x15xf32>
    %24 = vector.extract_strided_slice %7 {offsets = [0, 14], sizes = [16, 1], strides = [1, 1]} : vector<16x16xf32> to vector<16x1xf32>
    %25 = tpu.concatenate %23, %24 in 1 : vector<16x15xf32>, vector<16x1xf32> -> vector<16x16xf32>
    %cst_6 = arith.constant 2.500000e-01 : f32
    %26 = vector.broadcast %cst_6 : f32 to vector<16x16xf32>
    %27 = arith.mulf %26, %25 : vector<16x16xf32>
    %28 = arith.addf %22, %27 : vector<16x16xf32>
    %29 = vector.extract_strided_slice %7 {offsets = [0, 2], sizes = [16, 14], strides = [1, 1]} : vector<16x16xf32> to vector<16x14xf32>
    %30 = vector.extract_strided_slice %7 {offsets = [0, 14], sizes = [16, 1], strides = [1, 1]} : vector<16x16xf32> to vector<16x1xf32>
    %31 = vector.extract_strided_slice %7 {offsets = [0, 13], sizes = [16, 1], strides = [1, 1]} : vector<16x16xf32> to vector<16x1xf32>
    %32 = tpu.concatenate %29, %30, %31 in 1 : vector<16x14xf32>, vector<16x1xf32>, vector<16x1xf32> -> vector<16x16xf32>
    %cst_7 = arith.constant 6.250000e-02 : f32
    %33 = vector.broadcast %cst_7 : f32 to vector<16x16xf32>
    %34 = arith.mulf %33, %32 : vector<16x16xf32>
    %35 = arith.addf %28, %34 : vector<16x16xf32>
    %c0_8 = arith.constant 0 : index
    %c0_9 = arith.constant 0 : index
    %36 = vector.load %arg2[%c0_8, %c0_9] : memref<16x16xf32, #tpu.memory_space<vmem>>, vector<16x16xf32>
    tpu.vector_store %arg2[%c0_8, %c0_9], %35 {strides = array<i32>} : memref<16x16xf32, #tpu.memory_space<vmem>>, vector<16x16xf32>,
    return
  }
  func.func @transform_0(%arg0: i32) -> (i32, i32) {
    %c0_i32 = arith.constant 0 : i32
    %c0_i32_0 = arith.constant 0 : i32
    return %arg0, %c0_i32 : i32, i32
  }
  func.func @transform_1(%arg0: i32) -> (i32, i32) {
    %c0_i32 = arith.constant 0 : i32
    %c0_i32_0 = arith.constant 0 : i32
    return %arg0, %c0_i32 : i32, i32
  }
}

module attributes {stable_mosaic.version = 11 : i64} {
  func.func @_vblur_kernel(%arg0: i32, %arg1: memref<16x16xf32, #tpu.memory_space<vmem>>, %arg2: memref<16x16xf32, #tpu.memory_space<vmem>>) attributes {dimension_semantics = [#tpu.dimension_semantics<parallel>], iteration_bounds = array<i64: 1>, scalar_prefetch = 0 : i64, scratch_operands = 0 : i64, tpu.core_type = #tpu.core_type<tc>, window_params = [{transform_indices = @transform_0, window_bounds = array<i64: 16, 16>}, {transform_indices = @transform_1, window_bounds = array<i64: 16, 16>}]} {
    %c0 = arith.constant 0 : index
    %c0_0 = arith.constant 0 : index
    %0 = vector.load %arg1[%c0, %c0_0] : memref<16x16xf32, #tpu.memory_space<vmem>>, vector<16x16xf32>
    %cst = arith.constant 3.750000e-01 : f32
    %1 = vector.broadcast %cst : f32 to vector<16x16xf32>
    %2 = arith.mulf %1, %0 : vector<16x16xf32>
    %3 = vector.extract_strided_slice %0 {offsets = [2, 0], sizes = [1, 16], strides = [1, 1]} : vector<16x16xf32> to vector<1x16xf32>
    %4 = vector.extract_strided_slice %0 {offsets = [1, 0], sizes = [1, 16], strides = [1, 1]} : vector<16x16xf32> to vector<1x16xf32>
    %5 = vector.extract_strided_slice %0 {offsets = [0, 0], sizes = [14, 16], strides = [1, 1]} : vector<16x16xf32> to vector<14x16xf32>
    %6 = tpu.concatenate %3, %4, %5 in 0 : vector<1x16xf32>, vector<1x16xf32>, vector<14x16xf32> -> vector<16x16xf32>
    %cst_1 = arith.constant 6.250000e-02 : f32
    %7 = vector.broadcast %cst_1 : f32 to vector<16x16xf32>
    %8 = arith.mulf %7, %6 : vector<16x16xf32>
    %9 = arith.addf %2, %8 : vector<16x16xf32>
    %10 = vector.extract_strided_slice %0 {offsets = [1, 0], sizes = [1, 16], strides = [1, 1]} : vector<16x16xf32> to vector<1x16xf32>
    %11 = vector.extract_strided_slice %0 {offsets = [0, 0], sizes = [15, 16], strides = [1, 1]} : vector<16x16xf32> to vector<15x16xf32>
    %12 = tpu.concatenate %10, %11 in 0 : vector<1x16xf32>, vector<15x16xf32> -> vector<16x16xf32>
    %cst_2 = arith.constant 2.500000e-01 : f32
    %13 = vector.broadcast %cst_2 : f32 to vector<16x16xf32>
    %14 = arith.mulf %13, %12 : vector<16x16xf32>
    %15 = arith.addf %9, %14 : vector<16x16xf32>
    %16 = vector.extract_strided_slice %0 {offsets = [1, 0], sizes = [15, 16], strides = [1, 1]} : vector<16x16xf32> to vector<15x16xf32>
    %17 = vector.extract_strided_slice %0 {offsets = [14, 0], sizes = [1, 16], strides = [1, 1]} : vector<16x16xf32> to vector<1x16xf32>
    %18 = tpu.concatenate %16, %17 in 0 : vector<15x16xf32>, vector<1x16xf32> -> vector<16x16xf32>
    %cst_3 = arith.constant 2.500000e-01 : f32
    %19 = vector.broadcast %cst_3 : f32 to vector<16x16xf32>
    %20 = arith.mulf %19, %18 : vector<16x16xf32>
    %21 = arith.addf %15, %20 : vector<16x16xf32>
    %22 = vector.extract_strided_slice %0 {offsets = [2, 0], sizes = [14, 16], strides = [1, 1]} : vector<16x16xf32> to vector<14x16xf32>
    %23 = vector.extract_strided_slice %0 {offsets = [14, 0], sizes = [1, 16], strides = [1, 1]} : vector<16x16xf32> to vector<1x16xf32>
    %24 = vector.extract_strided_slice %0 {offsets = [13, 0], sizes = [1, 16], strides = [1, 1]} : vector<16x16xf32> to vector<1x16xf32>
    %25 = tpu.concatenate %22, %23, %24 in 0 : vector<14x16xf32>, vector<1x16xf32>, vector<1x16xf32> -> vector<16x16xf32>
    %cst_4 = arith.constant 6.250000e-02 : f32
    %26 = vector.broadcast %cst_4 : f32 to vector<16x16xf32>
    %27 = arith.mulf %26, %25 : vector<16x16xf32>
    %28 = arith.addf %21, %27 : vector<16x16xf32>
    %cst_5 = arith.constant 5.000000e-01 : f32
    %29 = vector.broadcast %cst_5 : f32 to vector<16x16xf32>
    %30 = arith.addf %28, %29 : vector<16x16xf32>
    %31 = math.floor %30 : vector<16x16xf32>
    %cst_6 = arith.constant 0.000000e+00 : f32
    %cst_7 = arith.constant 2.550000e+02 : f32
    %32 = vector.broadcast %cst_6 : f32 to vector<16x16xf32>
    %33 = arith.maximumf %32, %31 : vector<16x16xf32>
    %34 = vector.broadcast %cst_7 : f32 to vector<16x16xf32>
    %35 = arith.minimumf %34, %33 : vector<16x16xf32>
    %c0_8 = arith.constant 0 : index
    %c0_9 = arith.constant 0 : index
    %36 = vector.load %arg2[%c0_8, %c0_9] : memref<16x16xf32, #tpu.memory_space<vmem>>, vector<16x16xf32>
    tpu.vector_store %arg2[%c0_8, %c0_9], %35 {strides = array<i32>} : memref<16x16xf32, #tpu.memory_space<vmem>>, vector<16x16xf32>,
    return
  }
  func.func @transform_0(%arg0: i32) -> (i32, i32) {
    %c0_i32 = arith.constant 0 : i32
    %c0_i32_0 = arith.constant 0 : i32
    return %c0_i32, %arg0 : i32, i32
  }
  func.func @transform_1(%arg0: i32) -> (i32, i32) {
    %c0_i32 = arith.constant 0 : i32
    %c0_i32_0 = arith.constant 0 : i32
    return %c0_i32, %arg0 : i32, i32
  }
}

module attributes {stable_mosaic.version = 11 : i64} {
  func.func @_mask_kernel(%arg0: i32, %arg1: memref<16x16xf32, #tpu.memory_space<vmem>>, %arg2: memref<16x16xi8, #tpu.memory_space<vmem>>, %arg3: memref<16x16xf32, #tpu.memory_space<vmem>>) attributes {dimension_semantics = [#tpu.dimension_semantics<parallel>], iteration_bounds = array<i64: 1>, scalar_prefetch = 0 : i64, scratch_operands = 0 : i64, tpu.core_type = #tpu.core_type<tc>, window_params = [{transform_indices = @transform_0, window_bounds = array<i64: 16, 16>}, {transform_indices = @transform_1, window_bounds = array<i64: 16, 16>}, {transform_indices = @transform_2, window_bounds = array<i64: 16, 16>}]} {
    %c0 = arith.constant 0 : index
    %c0_0 = arith.constant 0 : index
    %0 = vector.load %arg1[%c0, %c0_0] : memref<16x16xf32, #tpu.memory_space<vmem>>, vector<16x16xf32>
    %cst = arith.constant 2.550000e+02 : f32
    %1 = vector.broadcast %cst : f32 to vector<16x16xf32>
    %2 = arith.mulf %1, %0 : vector<16x16xf32>
    %cst_1 = arith.constant 0.000000e+00 : f32
    %cst_2 = arith.constant 2.550000e+02 : f32
    %3 = vector.broadcast %cst_1 : f32 to vector<16x16xf32>
    %4 = arith.maximumf %3, %2 : vector<16x16xf32>
    %5 = vector.broadcast %cst_2 : f32 to vector<16x16xf32>
    %6 = arith.minimumf %5, %4 : vector<16x16xf32>
    %7 = math.floor %6 : vector<16x16xf32>
    %c0_3 = arith.constant 0 : index
    %c0_4 = arith.constant 0 : index
    %8 = vector.load %arg2[%c0_3, %c0_4] : memref<16x16xi8, #tpu.memory_space<vmem>>, vector<16x16xi8>
    %c0_i8 = arith.constant 0 : i8
    %9 = vector.broadcast %c0_i8 : i8 to vector<16x16xi8>
    %10 = arith.cmpi ne, %8, %9 : vector<16x16xi8>
    %cst_5 = arith.constant 0.000000e+00 : f32
    %11 = vector.broadcast %cst_5 : f32 to vector<16x16xf32>
    %12 = arith.select %10, %7, %11 : vector<16x16xi1>, vector<16x16xf32>
    %c0_6 = arith.constant 0 : index
    %c0_7 = arith.constant 0 : index
    %13 = vector.load %arg3[%c0_6, %c0_7] : memref<16x16xf32, #tpu.memory_space<vmem>>, vector<16x16xf32>
    tpu.vector_store %arg3[%c0_6, %c0_7], %12 {strides = array<i32>} : memref<16x16xf32, #tpu.memory_space<vmem>>, vector<16x16xf32>,
    return
  }
  func.func @transform_0(%arg0: i32) -> (i32, i32) {
    %c0_i32 = arith.constant 0 : i32
    %c0_i32_0 = arith.constant 0 : i32
    return %arg0, %c0_i32 : i32, i32
  }
  func.func @transform_1(%arg0: i32) -> (i32, i32) {
    %c0_i32 = arith.constant 0 : i32
    %c0_i32_0 = arith.constant 0 : i32
    return %arg0, %c0_i32 : i32, i32
  }
  func.func @transform_2(%arg0: i32) -> (i32, i32) {
    %c0_i32 = arith.constant 0 : i32
    %c0_i32_0 = arith.constant 0 : i32
    return %arg0, %c0_i32 : i32, i32
  }
}

</mosaic_0001>

<llo_original>
// kernel: _exterior_pipeline.4
$region0: #{_exterior_pipeline.4}
  #allocation0 [shape = 'u32[]', space=smem, size = 0x4, offset = 0x4, fixed_abs, tag = 'smem constant byte address 0x4 - core index']
  #allocation1 [shape = 'u32[72,128]{1,0:T(1,128)}', space=vmem, size = 0x9000, scoped, tag = 'internal scratch']
  %s0 = inlined_call_operand.vmem [shape: f32[16,16], index: 0, kind: input, shape index: {}]
  %s1 = inlined_call_operand.vmem [shape: f32[16,16], index: 1, kind: output, shape index: {}]
  %s2 = sld [smem:[#allocation0]]
  $region14: #{_exterior_pipeline.4} parent=0
    _
  %s4 = ssub.s32 1, %s2
  %s5 = scalar_select 0, %s4, %s2
  // Predicated region
  $region2: #{_exterior_pipeline.4} parent=0 // pred_check
    _
  $region3: #{_exterior_pipeline.4} parent=0 // pred_check_branch
    %7 = sbr.rel (0) target = $region5
  $region4: #{_exterior_pipeline.4} parent=0 // pred_region
    _
  $region5: #{_exterior_pipeline.4} parent=0 // pred_fallthru
    _
  %v8 = vld [vmem:[%s0] sm:$0xff]
  %v9 = vld [vmem:[%s0 + $0x8] sm:$0xff]
  %v10 = vmul.f32 %v8, 0.375
  %v11 = vmul.f32 %v9, 0.375
  %v13 = vrot.slane %v8, 2
  %vm16 = vcmask 1041408
  %v17 = vrot.slane %v8, 6
  %v18 = vrot.slane %v9, 6
  %v19 = vsel %vm16, %v17, %v18
  %vm22 = vcmask 1040384
  %v23 = vsel %vm22, %v13, %v8
  %v24 = vsel %vm16, %v23, %v17
  %v25 = vmul.f32 %v24, 0.0625
  %v26 = vmul.f32 %v19, 0.0625
  %v27 = vadd.f32 %v10, %v25
  %v28 = vadd.f32 %v11, %v26
  %v29 = vrot.slane %v8, 1
  %v31 = vrot.slane %v8, 7
  %v32 = vrot.slane %v9, 7
  %v33 = vsel %vm22, %v31, %v32
  %v36 = vsel %vm22, %v29, %v31
  %v37 = vmul.f32 %v36, 0.25
  %v38 = vmul.f32 %v33, 0.25
  %v39 = vadd.f32 %v27, %v37
  %v40 = vadd.f32 %v28, %v38
  %vm41 = vcmask 1046528
  %v42 = vrot.slane %v9, 1
  %v43 = vsel %vm41, %v29, %v42
  %v47 = vsel %vm41, %v42, %v32
  %v48 = vmul.f32 %v43, 0.25
  %v49 = vmul.f32 %v47, 0.25
  %v50 = vadd.f32 %v39, %v48
  %v51 = vadd.f32 %v40, %v49
  %vm52 = vcmask 1045504
  %v53 = vrot.slane %v9, 2
  %v54 = vsel %vm52, %v13, %v53
  %v58 = vsel %vm52, %v53, %v9
  %v59 = vsel %vm41, %v58, %v18
  %v60 = vmul.f32 %v54, 0.0625
  %v61 = vmul.f32 %v59, 0.0625
  %v62 = vadd.f32 %v50, %v60
  %v63 = vadd.f32 %v51, %v61
  %v64 = vadd.f32 %v62, 0.5
  %v65 = vadd.f32 %v63, 0.5
  %v66 = vfloor.f32 %v64
  %v67 = vfloor.f32 %v65
  %v68 = vmax.f32 %v66, 0.0
  %v69 = vmax.f32 %v67, 0.0
  %v70 = vmin.f32 %v68, 255.0
  %v71 = vmin.f32 %v69, 255.0
  %vm72 = vcmask 130048
  %73 = vst.msk [vmem:[%s1] sm:$0xff] %vm72, %v70
  %74 = vst.msk [vmem:[%s1 + $0x8] sm:$0xff] %vm72, %v71
  // Predicated region
  $region6: #{_exterior_pipeline.4} parent=0 // pred_check
    _
  $region7: #{_exterior_pipeline.4} parent=0 // pred_check_branch
    %76 = sbr.rel (0) target = $region9
  $region8: #{_exterior_pipeline.4} parent=0 // pred_region
    _
  $region9: #{_exterior_pipeline.4} parent=0 // pred_fallthru
    _
  // Predicated region
  $region10: #{_exterior_pipeline.4} parent=0 // pred_check
    _
  $region11: #{_exterior_pipeline.4} parent=0 // pred_check_branch
    %78 = sbr.rel (0) target = $region13
  $region12: #{_exterior_pipeline.4} parent=0 // pred_region
    _
  $region13: #{_exterior_pipeline.4} parent=0 // pred_fallthru
    _

// kernel: _exterior_pipeline.3
$region0: #{_exterior_pipeline.3}
  #allocation0 [shape = 'u32[]', space=smem, size = 0x4, offset = 0x4, fixed_abs, tag = 'smem constant byte address 0x4 - core index']
  #allocation1 [shape = 'u32[72,128]{1,0:T(1,128)}', space=vmem, size = 0x9000, scoped, tag = 'internal scratch']
  %s0 = inlined_call_operand.hbm [shape: f32[16,16], index: 0, kind: input, shape index: {}]
  %s1 = inlined_call_operand.vmem [shape: f32[16,16], index: 1, kind: output, shape index: {}]
  %s2 = sld [smem:[#allocation0]]
  $region18: #{_exterior_pipeline.3} parent=0
    _
  %s4 = ssub.s32 1, %s2
  %s5 = scalar_select 0, %s4, %s2
  $region1: #{_exterior_pipeline.3} parent=0
    #allocation2 [shape = 'u8[8192]{0}', space=vmem, size = 0x2000, scoped, tag = 'input window, operand 0, single buffered']
    #allocation3 [shape = 's32[1]{0}', space=sflag, size = 0x4, scoped, tag = 'scoped memory for _exterior_pipeline.3']
    %6 = vsyncpa [#allocation3], 0
    // Predicated region
    $region2: #{_exterior_pipeline.3} parent=1 // pred_check
      _
    $region3: #{_exterior_pipeline.3} parent=1 // pred_check_branch
      %8 = sbr.rel (0) target = $region5
    $region4: #{_exterior_pipeline.3} parent=1 // pred_region
      %10 = vsyncadd [#allocation3], 0
      %s11 = sshll.u32 %s0, 4
      %s12 = int_to_ptr.hbm [resolvable:$true] %s11
      %s13 = sshll.u32 [#allocation2], 4
      %s14 = int_to_ptr.vmem [resolvable:$true] %s13
      %19 = dma.hbm_to_vmem [thread:$0]  %s12, 256, %s14, [#allocation3], 128, 128, 8
    $region5: #{_exterior_pipeline.3} parent=1 // pred_fallthru
      _
    // Predicated region
    $region6: #{_exterior_pipeline.3} parent=1 // pred_check
      _
    $region7: #{_exterior_pipeline.3} parent=1 // pred_check_branch
      %21 = sbr.rel (0) target = $region9
    $region8: #{_exterior_pipeline.3} parent=1 // pred_region
      %23 = dma.done [#allocation3], 256
    $region9: #{_exterior_pipeline.3} parent=1 // pred_fallthru
      _
    %v24 = vld [vmem:[#allocation2] sm:$0xff]
    %v25 = vld [vmem:[#allocation2 + $0x8] sm:$0xff]
    %v26 = vmul.f32 %v24, 255.0
    %v27 = vmul.f32 %v25, 255.0
    %v28 = vmax.f32 %v26, 0.0
    %v29 = vmax.f32 %v27, 0.0
    %v30 = vmin.f32 %v28, 255.0
    %v31 = vmin.f32 %v29, 255.0
    %v32 = vfloor.f32 %v30
    %v33 = vfloor.f32 %v31
    %v34 = vmul.f32 %v32, 0.375
    %v35 = vmul.f32 %v33, 0.375
    %38 = vrot.lane.b32.xlu0 %v32, 126
    %v39 = vpop.permute.xlu0 %38
    %40 = vrot.lane.b32.xlu0 %v33, 126
    %v41 = vpop.permute.xlu0 %40
    %44 = vrot.lane.b32.xlu0 %v32, 2
    %v45 = vpop.permute.xlu0 %44
    %46 = vrot.lane.b32.xlu0 %v33, 2
    %v47 = vpop.permute.xlu0 %46
    %vm50 = vcmask 7168
    %v51 = vsel %vm50, %v39, %v32
    %v52 = vsel %vm50, %v41, %v33
    %vm53 = vcmask 15360
    %v54 = vsel %vm53, %v51, %v45
    %v55 = vsel %vm53, %v52, %v47
    %v56 = vmul.f32 %v54, 0.0625
    %v57 = vmul.f32 %v55, 0.0625
    %v58 = vadd.f32 %v34, %v56
    %v59 = vadd.f32 %v35, %v57
    %60 = vrot.lane.b32.xlu0 %v32, 127
    %v61 = vpop.permute.xlu0 %60
    %62 = vrot.lane.b32.xlu0 %v33, 127
    %v63 = vpop.permute.xlu0 %62
    %66 = vrot.lane.b32.xlu0 %v32, 1
    %v67 = vpop.permute.xlu0 %66
    %68 = vrot.lane.b32.xlu0 %v33, 1
    %v69 = vpop.permute.xlu0 %68
    %v72 = vsel %vm50, %v61, %v67
    %v73 = vsel %vm50, %v63, %v69
    %v74 = vmul.f32 %v72, 0.25
    %v75 = vmul.f32 %v73, 0.25
    %v76 = vadd.f32 %v58, %v74
    %v77 = vadd.f32 %v59, %v75
    %vm78 = vcmask 121856
    %v79 = vsel %vm78, %v61, %v67
    %v80 = vsel %vm78, %v63, %v69
    %v81 = vmul.f32 %v79, 0.25
    %v82 = vmul.f32 %v80, 0.25
    %v83 = vadd.f32 %v76, %v81
    %v84 = vadd.f32 %v77, %v82
    %vm85 = vcmask 113664
    %v86 = vsel %vm85, %v39, %v32
    %v87 = vsel %vm85, %v41, %v33
    %v88 = vsel %vm78, %v86, %v45
    %v89 = vsel %vm78, %v87, %v47
    %v90 = vmul.f32 %v88, 0.0625
    %v91 = vmul.f32 %v89, 0.0625
    %v92 = vadd.f32 %v83, %v90
    %v93 = vadd.f32 %v84, %v91
    %vm94 = vcmask 130048
    %95 = vst.msk [vmem:[%s1] sm:$0xff] %vm94, %v92
    %96 = vst.msk [vmem:[%s1 + $0x8] sm:$0xff] %vm94, %v93
    // Predicated region
    $region10: #{_exterior_pipeline.3} parent=1 // pred_check
      _
    $region11: #{_exterior_pipeline.3} parent=1 // pred_check_branch
      %98 = sbr.rel (0) target = $region13
    $region12: #{_exterior_pipeline.3} parent=1 // pred_region
      _
    $region13: #{_exterior_pipeline.3} parent=1 // pred_fallthru
      _
    // Predicated region
    $region14: #{_exterior_pipeline.3} parent=1 // pred_check
      _
    $region15: #{_exterior_pipeline.3} parent=1 // pred_check_branch
      %100 = sbr.rel (0) target = $region17
    $region16: #{_exterior_pipeline.3} parent=1 // pred_region
      _
    $region17: #{_exterior_pipeline.3} parent=1 // pred_fallthru
      _
    %101 = vsyncpa [#allocation3], 1

// kernel: _exterior_pipeline.5
$region0: #{_exterior_pipeline.5}
  #allocation0 [shape = 'u32[]', space=smem, size = 0x4, offset = 0x4, fixed_abs, tag = 'smem constant byte address 0x4 - core index']
  #allocation1 [shape = 'u32[72,128]{1,0:T(1,128)}', space=vmem, size = 0x9000, scoped, tag = 'internal scratch']
  %s0 = inlined_call_operand.vmem [shape: f32[16,16], index: 0, kind: input, shape index: {}]
  %s1 = inlined_call_operand.vmem [shape: u8[16,16], index: 1, kind: input, shape index: {}]
  %s2 = inlined_call_operand.hbm [shape: f32[16,16], index: 2, kind: output, shape index: {}]
  %s3 = sld [smem:[#allocation0]]
  $region18: #{_exterior_pipeline.5} parent=0
    _
  %s5 = ssub.s32 1, %s3
  %s6 = scalar_select 0, %s5, %s3
  $region1: #{_exterior_pipeline.5} parent=0
    #allocation2 [shape = 'u8[8192]{0}', space=vmem, size = 0x2000, scoped, tag = 'output window, operand 0, single buffered']
    #allocation3 [shape = 's32[1]{0}', space=sflag, size = 0x4, scoped, tag = 'scoped memory for _exterior_pipeline.5']
    %7 = vsyncpa [#allocation3], 0
    // Predicated region
    $region2: #{_exterior_pipeline.5} parent=1 // pred_check
      _
    $region3: #{_exterior_pipeline.5} parent=1 // pred_check_branch
      %9 = sbr.rel (0) target = $region5
    $region4: #{_exterior_pipeline.5} parent=1 // pred_region
      _
    $region5: #{_exterior_pipeline.5} parent=1 // pred_fallthru
      _
    // Predicated region
    $region6: #{_exterior_pipeline.5} parent=1 // pred_check
      _
    $region7: #{_exterior_pipeline.5} parent=1 // pred_check_branch
      %11 = sbr.rel (0) target = $region9
    $region8: #{_exterior_pipeline.5} parent=1 // pred_region
      _
    $region9: #{_exterior_pipeline.5} parent=1 // pred_fallthru
      _
    %v14 = vld [vmem:[%s0] sm:$0xff]
    %v15 = vld [vmem:[%s0 + $0x8] sm:$0xff]
    %v16 = vmul.f32 %v14, 255.0
    %v17 = vmul.f32 %v15, 255.0
    %v18 = vmax.f32 %v16, 0.0
    %v19 = vmax.f32 %v17, 0.0
    %v20 = vmin.f32 %v18, 255.0
    %v21 = vmin.f32 %v19, 255.0
    %v22 = vfloor.f32 %v20
    %v23 = vfloor.f32 %v21
    %v24 = vld [vmem:[%s1] sm:$0x3]
    %v25 = vld [vmem:[%s1 + $0x2] sm:$0x3]
    %vm26 = vnez %v24
    %vm27 = vnez %v25
    %v28 = vsel %vm26, 16843009, 0
    %v29 = vsel %vm27, 16843009, 0
    %v30 = vunpack.c.0.s8 %v28
    %v31 = vunpack.c.0.s8 %v29
    %vm32 = vcmp.ne.s32.totalorder %v30, 0
    %vm33 = vcmp.ne.s32.totalorder %v31, 0
    %v34 = vsel %vm32, %v22, 0.0
    %v35 = vsel %vm33, %v23, 0.0
    %vm36 = vcmask 130048
    %37 = vst.msk [vmem:[#allocation2] sm:$0xff] %vm36, %v34
    %38 = vst.msk [vmem:[#allocation2 + $0x8] sm:$0xff] %vm36, %v35
    // Predicated region
    $region10: #{_exterior_pipeline.5} parent=1 // pred_check
      _
    $region11: #{_exterior_pipeline.5} parent=1 // pred_check_branch
      %40 = sbr.rel (0) target = $region13
    $region12: #{_exterior_pipeline.5} parent=1 // pred_region
      %42 = vsyncadd [#allocation3], 0
      %s43 = sshll.u32 [#allocation2], 4
      %s44 = int_to_ptr.vmem [resolvable:$true] %s43
      %s45 = sshll.u32 %s2, 4
      %s46 = int_to_ptr.hbm [resolvable:$true] %s45
      %51 = dma.vmem_to_hbm [thread:$0]  %s44, 256, %s46, [#allocation3], 128, 128, 8
    $region13: #{_exterior_pipeline.5} parent=1 // pred_fallthru
      _
    // Predicated region
    $region14: #{_exterior_pipeline.5} parent=1 // pred_check
      _
    $region15: #{_exterior_pipeline.5} parent=1 // pred_check_branch
      %53 = sbr.rel (0) target = $region17
    $region16: #{_exterior_pipeline.5} parent=1 // pred_region
      %55 = dma.done [#allocation3], 256
    $region17: #{_exterior_pipeline.5} parent=1 // pred_fallthru
      _
    %56 = vsyncpa [#allocation3], 1

</llo_original>
